<compile_context>
chip_gen: v5e
topology: v5e:2x2
jax: 0.10.0
libtpu: 0.0.40
codegen_flags: <defaults>
</compile_context>

<pallas_src>
import functools

import jax
import jax.numpy as jnp
from jax.experimental import pallas as pl
from jax.experimental.pallas import tpu as pltpu


def _round_up(x: int, m: int) -> int:
    return ((x + m - 1) // m) * m


# ---------------------------------------------------------------------------
# Pallas kernel: fused  relu(x @ Wx + onehot(y) @ Wcls + b1) @ W_head + b_head
# ---------------------------------------------------------------------------
def _target_head_kernel(y_ref, x_ref, wx_ref, wcls_ref, b1_ref,
                        wh_ref, bh_ref, out_ref):
    x = x_ref[...]                                            # (TB, d_in)   f32
    y = y_ref[...]                                            # (TB, 1)      int32
    tb = x.shape[0]
    n_classes = wcls_ref.shape[0]

    # one_hot(y) @ w_cls == w_cls[y]: class-conditional additive row, computed
    # in-kernel so concat([x, one_hot(y)]) never materializes in HBM.
    cls_iota = jax.lax.broadcasted_iota(jnp.int32, (tb, n_classes), 1)
    onehot = (cls_iota == y).astype(wcls_ref.dtype)           # (TB, n_classes) f32

    # First layer (f32 operands, f32 accumulation; compute is not the
    # bottleneck, so no bf16 casts -> tighter numerics for free).
    h = jnp.dot(x, wx_ref[...], preferred_element_type=jnp.float32)
    h = h + jnp.dot(onehot, wcls_ref[...], preferred_element_type=jnp.float32)
    h = jnp.maximum(h + b1_ref[...], jnp.float32(0.0))        # (TB, H) f32

    # Fused output heads: one MXU push, one contiguous bf16 store of
    # (TB, F + C0 + C1); split + upcast happens outside the kernel.
    out = jnp.dot(h, wh_ref[...], preferred_element_type=jnp.float32) + bh_ref[...]
    out_ref[...] = out.astype(out_ref.dtype)


# ---------------------------------------------------------------------------
# JAX glue + single pallas_call
# ---------------------------------------------------------------------------
@functools.partial(jax.jit,
                   static_argnames=("n_num_features", "numeric_target", "block_b"))
def target_head_forward(x, y, params, *, n_num_features,
                        numeric_target=False, block_b=4096):
    """x: (B, d_in) f32, y: (B,) int class ids (multiclass target).

    Returns (num_out (B, n_num_features), [cat0 (B, C0), cat1 (B, C1)]).
    """
    if numeric_target:
        raise NotImplementedError(
            "TODO(synk): numeric_target / n_classes==2 path (n_y_bias == 1) "
            "is not implemented in the Pallas kernel.")

    B, d_in = x.shape
    H = params["w_first"].shape[0]
    D = params["w_first"].shape[1]
    n_classes = D - d_in                       # n_y_bias == n_classes (multiclass)
    if n_classes < 2:
        raise ValueError(
            "w_first width implies n_y_bias == 1 (numeric/binary target); only "
            "the multiclass path is supported by this kernel.")
    F_ = n_num_features
    C0 = params["w_cat0"].shape[0]
    C1 = params["w_cat1"].shape[0]
    N_out = F_ + C0 + C1

    # --- batch tiling --------------------------------------------------------
    # Derive TB from the grid count (minimal padding); force >= 2 grid steps
    # for large single-tile batches so v7x can split across its 2 TensorCores.
    grid_n = max(1, pl.cdiv(B, block_b))
    if grid_n == 1 and B >= 1024:
        grid_n = 2
    TB = _round_up(pl.cdiv(B, grid_n), 8)
    B_pad = TB * grid_n

    # --- weight re-layout (once per call, tiny, resident in VMEM, kept f32) --
    w_first_t = params["w_first"].T.astype(jnp.float32)         # (d_in + C, H)
    w_x = w_first_t[:d_in]                                      # (d_in, H)
    w_cls = w_first_t[d_in:]                                    # (n_classes, H)
    b1 = params["b_first"][None, :].astype(jnp.float32)         # (1, H)

    # Fuse numeric head (collapsed NLinear) + both categorical heads.
    w_head = jnp.concatenate(
        [params["w_num"][:, :, 0].T, params["w_cat0"].T, params["w_cat1"].T],
        axis=1).astype(jnp.float32)                             # (H, N_out)
    b_head = jnp.concatenate(
        [params["b_num"][:, 0], params["b_cat0"], params["b_cat1"]],
        axis=0)[None, :].astype(jnp.float32)                    # (1, N_out)

    # --- activations: stream x in native f32, no wrapper-side cast pass ------
    x_in = x.astype(jnp.float32)                                # no-op if already f32
    y_i = y.astype(jnp.int32).reshape(B, 1)
    if B_pad != B:
        x_in = jnp.pad(x_in, ((0, B_pad - B), (0, 0)))
        y_i = jnp.pad(y_i, ((0, B_pad - B), (0, 0)))

    grid = (grid_n,)

    cost = pl.CostEstimate(
        flops=2 * B_pad * (D * H + H * N_out),
        transcendentals=0,
        bytes_accessed=(x_in.size * 4 + y_i.size * 4
                        + (w_x.size + w_cls.size + w_head.size
                           + b1.size + b_head.size) * 4
                        + B_pad * N_out * 2),
    )

    out = pl.pallas_call(
        _target_head_kernel,
        out_shape=jax.ShapeDtypeStruct((B_pad, N_out), jnp.bfloat16),
        grid_spec=pltpu.PrefetchScalarGridSpec(
            num_scalar_prefetch=0,
            grid=grid,
            in_specs=[
                pl.BlockSpec((TB, 1), lambda i: (i, 0)),            # y   (streamed)
                pl.BlockSpec((TB, d_in), lambda i: (i, 0)),         # x   (streamed, f32)
                pl.BlockSpec((d_in, H), lambda i: (0, 0)),          # w_x (resident)
                pl.BlockSpec((n_classes, H), lambda i: (0, 0)),     # w_cls
                pl.BlockSpec((1, H), lambda i: (0, 0)),             # b1
                pl.BlockSpec((H, N_out), lambda i: (0, 0)),         # w_head
                pl.BlockSpec((1, N_out), lambda i: (0, 0)),         # b_head
            ],
            out_specs=pl.BlockSpec((TB, N_out), lambda i: (i, 0)),  # fused bf16 output
        ),
        compiler_params=pltpu.CompilerParams(
            dimension_semantics=("parallel",),
            vmem_limit_bytes=48 * 1024 * 1024,   # > v5e's 16 MiB default, < v7x's 64 MiB physical
        ),
        cost_estimate=cost,
    )(y_i, x_in, w_x, w_cls, b1, w_head, b_head)

    out = out[:B].astype(jnp.float32)            # upcast + split outside the kernel
    num_out = out[:, :F_]
    cat0 = out[:, F_:F_ + C0]
    cat1 = out[:, F_ + C0:]
    return num_out, [cat0, cat1]


# ---------------------------------------------------------------------------
# Pure-JAX reference (mirrors the PyTorch forward exactly) for verification.
# ---------------------------------------------------------------------------
def target_head_reference(x, y, params, *, n_num_features):
    n_classes = params["w_first"].shape[1] - x.shape[1]
    y_oh = jax.nn.one_hot(y, n_classes, dtype=x.dtype)
    xc = jnp.concatenate([x, y_oh], axis=1)
    h = jax.nn.relu(xc @ params["w_first"].T + params["b_first"])       # (B, H)
    cat_out = [h @ params["w_cat0"].T + params["b_cat0"],
               h @ params["w_cat1"].T + params["b_cat1"]]
    h_rep = jnp.repeat(h[:, None, :], n_num_features, axis=1)           # (B, F, H)
    num = jnp.einsum("bfh,fho->bfo", h_rep, params["w_num"]) + params["b_num"]
    num = jnp.squeeze(num, axis=-1)                                      # (B, F)
    return num, cat_out


# ---------------------------------------------------------------------------
if __name__ == "__main__":
    # Small shapes consistent with the module.
    B = 8                 # batch
    d_in = 28             # input features
    n_classes = 4         # multiclass target -> n_y_bias = n_classes
    d_hidden = 32
    n_num_features = 8
    category_sizes = [3, 5]

    D = d_in + n_classes  # input width of `first`

    key = jax.random.PRNGKey(0)
    ks = jax.random.split(key, 10)

    # PyTorch parameter shapes:
    #   first.weight (H, D), first.bias (H)
    #   NLinear.weight (F, H, 1), NLinear.bias (F, 1)
    #   cat_out[i].weight (Ci, H), cat_out[i].bias (Ci)
    params = {
        "w_first": jax.random.normal(ks[0], (d_hidden, D), jnp.float32) * 0.1,
        "b_first": jax.random.normal(ks[1], (d_hidden,), jnp.float32) * 0.1,
        "w_num":   jax.random.normal(ks[2], (n_num_features, d_hidden, 1), jnp.float32) * 0.1,
        "b_num":   jax.random.normal(ks[3], (n_num_features, 1), jnp.float32) * 0.1,
        "w_cat0":  jax.random.normal(ks[4], (category_sizes[0], d_hidden), jnp.float32) * 0.1,
        "b_cat0":  jax.random.normal(ks[5], (category_sizes[0],), jnp.float32) * 0.1,
        "w_cat1":  jax.random.normal(ks[6], (category_sizes[1], d_hidden), jnp.float32) * 0.1,
        "b_cat1":  jax.random.normal(ks[7], (category_sizes[1],), jnp.float32) * 0.1,
    }

    x = jax.random.normal(ks[8], (B, d_in), jnp.float32)
    y = jax.random.randint(ks[9], (B,), 0, n_classes, jnp.int32)

    num_out, cat_out = target_head_forward(x, y, params, n_num_features=n_num_features)
    jax.block_until_ready(num_out)
    jax.block_until_ready(cat_out)

    # Verify against the pure-JAX f32 reference of the PyTorch forward.
    # Weights/x stay f32 in the kernel; only the fused output is rounded to
    # bf16 (plus default MXU precision), so the tolerance is comfortable.
    num_ref, cat_ref = target_head_reference(x, y, params, n_num_features=n_num_features)
    assert num_out.shape == (B, n_num_features)
    assert cat_out[0].shape == (B, category_sizes[0])
    assert cat_out[1].shape == (B, category_sizes[1])
    assert jnp.allclose(num_out, num_ref, atol=2e-2, rtol=2e-2)
    assert jnp.allclose(cat_out[0], cat_ref[0], atol=2e-2, rtol=2e-2)
    assert jnp.allclose(cat_out[1], cat_ref[1], atol=2e-2, rtol=2e-2)

    print("KERNEL_OK")
</pallas_src>

<mosaic_0001>
module attributes {stable_mosaic.version = 11 : i64} {
  func.func @_target_head_kernel(%arg0: i32, %arg1: memref<8x1xi32, #tpu.memory_space<vmem>>, %arg2: memref<8x28xf32, #tpu.memory_space<vmem>>, %arg3: memref<28x32xf32, #tpu.memory_space<vmem>>, %arg4: memref<4x32xf32, #tpu.memory_space<vmem>>, %arg5: memref<1x32xf32, #tpu.memory_space<vmem>>, %arg6: memref<32x16xf32, #tpu.memory_space<vmem>>, %arg7: memref<1x16xf32, #tpu.memory_space<vmem>>, %arg8: memref<8x16xbf16, #tpu.memory_space<vmem>>) attributes {dimension_semantics = [#tpu.dimension_semantics<parallel>], iteration_bounds = array<i64: 1>, scalar_prefetch = 0 : i64, scratch_operands = 0 : i64, tpu.core_type = #tpu.core_type<tc>, window_params = [{transform_indices = @transform_0, window_bounds = array<i64: 8, 1>}, {transform_indices = @transform_1, window_bounds = array<i64: 8, 28>}, {pipeline_mode = #tpu.pipeline_mode<synchronous>, transform_indices = @transform_2, window_bounds = array<i64: 28, 32>}, {pipeline_mode = #tpu.pipeline_mode<synchronous>, transform_indices = @transform_3, window_bounds = array<i64: 4, 32>}, {pipeline_mode = #tpu.pipeline_mode<synchronous>, transform_indices = @transform_4, window_bounds = array<i64: 1, 32>}, {pipeline_mode = #tpu.pipeline_mode<synchronous>, transform_indices = @transform_5, window_bounds = array<i64: 32, 16>}, {pipeline_mode = #tpu.pipeline_mode<synchronous>, transform_indices = @transform_6, window_bounds = array<i64: 1, 16>}, {transform_indices = @transform_7, window_bounds = array<i64: 8, 16>}]} {
    %c0 = arith.constant 0 : index
    %c0_0 = arith.constant 0 : index
    %0 = vector.load %arg2[%c0, %c0_0] : memref<8x28xf32, #tpu.memory_space<vmem>>, vector<8x28xf32>
    %c0_1 = arith.constant 0 : index
    %c0_2 = arith.constant 0 : index
    %1 = vector.load %arg1[%c0_1, %c0_2] : memref<8x1xi32, #tpu.memory_space<vmem>>, vector<8x1xi32>
    %2 = tpu.iota {dimensions = array<i32: 1>} : vector<8x4xi32>
    %3 = vector.broadcast %1 : vector<8x1xi32> to vector<8x4xi32>
    %4 = arith.cmpi eq, %2, %3 : vector<8x4xi32>
    %5 = arith.extui %4 : vector<8x4xi1> to vector<8x4xi32>
    %6 = arith.sitofp %5 : vector<8x4xi32> to vector<8x4xf32>
    %c0_3 = arith.constant 0 : index
    %c0_4 = arith.constant 0 : index
    %7 = vector.load %arg3[%c0_3, %c0_4] : memref<28x32xf32, #tpu.memory_space<vmem>>, vector<28x32xf32>
    %cst = arith.constant dense<0.000000e+00> : vector<8x32xf32>
    %8 = tpu.matmul %0, %7, %cst {dimension_numbers = #tpu.dot_dimension_numbers<[1], [0], [0], [1], [0, 0, 1, 1], [], []>} : vector<8x28xf32>, vector<28x32xf32>, vector<8x32xf32> -> vector<8x32xf32>
    %c0_5 = arith.constant 0 : index
    %c0_6 = arith.constant 0 : index
    %9 = vector.load %arg4[%c0_5, %c0_6] : memref<4x32xf32, #tpu.memory_space<vmem>>, vector<4x32xf32>
    %cst_7 = arith.constant dense<0.000000e+00> : vector<8x32xf32>
    %10 = tpu.matmul %6, %9, %cst_7 {dimension_numbers = #tpu.dot_dimension_numbers<[1], [0], [0], [1], [0, 0, 1, 1], [], []>} : vector<8x4xf32>, vector<4x32xf32>, vector<8x32xf32> -> vector<8x32xf32>
    %11 = arith.addf %8, %10 : vector<8x32xf32>
    %c0_8 = arith.constant 0 : index
    %c0_9 = arith.constant 0 : index
    %12 = vector.load %arg5[%c0_8, %c0_9] : memref<1x32xf32, #tpu.memory_space<vmem>>, vector<1x32xf32>
    %13 = vector.broadcast %12 : vector<1x32xf32> to vector<8x32xf32>
    %14 = arith.addf %11, %13 : vector<8x32xf32>
    %cst_10 = arith.constant 0.000000e+00 : f32
    %15 = vector.broadcast %cst_10 : f32 to vector<8x32xf32>
    %16 = arith.maximumf %14, %15 : vector<8x32xf32>
    %c0_11 = arith.constant 0 : index
    %c0_12 = arith.constant 0 : index
    %17 = vector.load %arg6[%c0_11, %c0_12] : memref<32x16xf32, #tpu.memory_space<vmem>>, vector<32x16xf32>
    %cst_13 = arith.constant dense<0.000000e+00> : vector<8x16xf32>
    %18 = tpu.matmul %16, %17, %cst_13 {dimension_numbers = #tpu.dot_dimension_numbers<[1], [0], [0], [1], [0, 0, 1, 1], [], []>} : vector<8x32xf32>, vector<32x16xf32>, vector<8x16xf32> -> vector<8x16xf32>
    %c0_14 = arith.constant 0 : index
    %c0_15 = arith.constant 0 : index
    %19 = vector.load %arg7[%c0_14, %c0_15] : memref<1x16xf32, #tpu.memory_space<vmem>>, vector<1x16xf32>
    %20 = vector.broadcast %19 : vector<1x16xf32> to vector<8x16xf32>
    %21 = arith.addf %18, %20 : vector<8x16xf32>
    %22 = arith.truncf %21 : vector<8x16xf32> to vector<8x16xbf16>
    %c0_16 = arith.constant 0 : index
    %c0_17 = arith.constant 0 : index
    %23 = vector.load %arg8[%c0_16, %c0_17] : memref<8x16xbf16, #tpu.memory_space<vmem>>, vector<8x16xbf16>
    tpu.vector_store %arg8[%c0_16, %c0_17], %22 {strides = array<i32>} : memref<8x16xbf16, #tpu.memory_space<vmem>>, vector<8x16xbf16>,
    return
  }
  func.func @transform_0(%arg0: i32) -> (i32, i32) {
    %c0_i32 = arith.constant 0 : i32
    %c0_i32_0 = arith.constant 0 : i32
    return %arg0, %c0_i32 : i32, i32
  }
  func.func @transform_1(%arg0: i32) -> (i32, i32) {
    %c0_i32 = arith.constant 0 : i32
    %c0_i32_0 = arith.constant 0 : i32
    return %arg0, %c0_i32 : i32, i32
  }
  func.func @transform_2(%arg0: i32) -> (i32, i32) {
    %c0_i32 = arith.constant 0 : i32
    %c0_i32_0 = arith.constant 0 : i32
    %c0_i32_1 = arith.constant 0 : i32
    return %c0_i32, %c0_i32_0 : i32, i32
  }
  func.func @transform_3(%arg0: i32) -> (i32, i32) {
    %c0_i32 = arith.constant 0 : i32
    %c0_i32_0 = arith.constant 0 : i32
    %c0_i32_1 = arith.constant 0 : i32
    return %c0_i32, %c0_i32_0 : i32, i32
  }
  func.func @transform_4(%arg0: i32) -> (i32, i32) {
    %c0_i32 = arith.constant 0 : i32
    %c0_i32_0 = arith.constant 0 : i32
    %c0_i32_1 = arith.constant 0 : i32
    return %c0_i32, %c0_i32_0 : i32, i32
  }
  func.func @transform_5(%arg0: i32) -> (i32, i32) {
    %c0_i32 = arith.constant 0 : i32
    %c0_i32_0 = arith.constant 0 : i32
    %c0_i32_1 = arith.constant 0 : i32
    return %c0_i32, %c0_i32_0 : i32, i32
  }
  func.func @transform_6(%arg0: i32) -> (i32, i32) {
    %c0_i32 = arith.constant 0 : i32
    %c0_i32_0 = arith.constant 0 : i32
    %c0_i32_1 = arith.constant 0 : i32
    return %c0_i32, %c0_i32_0 : i32, i32
  }
  func.func @transform_7(%arg0: i32) -> (i32, i32) {
    %c0_i32 = arith.constant 0 : i32
    %c0_i32_0 = arith.constant 0 : i32
    return %arg0, %c0_i32 : i32, i32
  }
}

</mosaic_0001>

<llo_original>
// kernel: target_head_forward.1
$region0: #{target_head_forward.1}
  #allocation0 [shape = 'u32[]', space=smem, size = 0x4, offset = 0x4, fixed_abs, tag = 'smem constant byte address 0x4 - core index']
  #allocation1 [shape = 'u32[72,128]{1,0:T(1,128)}', space=vmem, size = 0x9000, scoped, tag = 'internal scratch']
  %s0 = inlined_call_operand.vmem [shape: s32[8,1], index: 0, kind: input, shape index: {}]
  %s1 = inlined_call_operand.vmem [shape: f32[8,28], index: 1, kind: input, shape index: {}]
  %s2 = inlined_call_operand.vmem [shape: f32[28,32], index: 2, kind: input, shape index: {}]
  %s3 = inlined_call_operand.vmem [shape: f32[4,32], index: 3, kind: input, shape index: {}]
  %s4 = inlined_call_operand.vmem [shape: f32[1,32], index: 4, kind: input, shape index: {}]
  %s5 = inlined_call_operand.vmem [shape: f32[32,16], index: 5, kind: input, shape index: {}]
  %s6 = inlined_call_operand.vmem [shape: f32[1,16], index: 6, kind: input, shape index: {}]
  %s7 = inlined_call_operand.vmem [shape: bf16[8,16], index: 7, kind: output, shape index: {}]
  %s8 = sld [smem:[#allocation0]]
  $region38: #{target_head_forward.1} parent=0
    _
  %s10 = ssub.s32 1, %s8
  %s11 = scalar_select 0, %s10, %s8
  // Predicated region
  $region2: #{target_head_forward.1} parent=0 // pred_check
    _
  $region3: #{target_head_forward.1} parent=0 // pred_check_branch
    %13 = sbr.rel (0) target = $region5
  $region4: #{target_head_forward.1} parent=0 // pred_region
    _
  $region5: #{target_head_forward.1} parent=0 // pred_fallthru
    _
  // Predicated region
  $region6: #{target_head_forward.1} parent=0 // pred_check
    _
  $region7: #{target_head_forward.1} parent=0 // pred_check_branch
    %15 = sbr.rel (0) target = $region9
  $region8: #{target_head_forward.1} parent=0 // pred_region
    _
  $region9: #{target_head_forward.1} parent=0 // pred_fallthru
    _
  // Predicated region
  $region10: #{target_head_forward.1} parent=0 // pred_check
    _
  $region11: #{target_head_forward.1} parent=0 // pred_check_branch
    %17 = sbr.rel (0) target = $region13
  $region12: #{target_head_forward.1} parent=0 // pred_region
    _
  $region13: #{target_head_forward.1} parent=0 // pred_fallthru
    _
  // Predicated region
  $region14: #{target_head_forward.1} parent=0 // pred_check
    _
  $region15: #{target_head_forward.1} parent=0 // pred_check_branch
    %19 = sbr.rel (0) target = $region17
  $region16: #{target_head_forward.1} parent=0 // pred_region
    _
  $region17: #{target_head_forward.1} parent=0 // pred_fallthru
    _
  // Predicated region
  $region18: #{target_head_forward.1} parent=0 // pred_check
    _
  $region19: #{target_head_forward.1} parent=0 // pred_check_branch
    %21 = sbr.rel (0) target = $region21
  $region20: #{target_head_forward.1} parent=0 // pred_region
    _
  $region21: #{target_head_forward.1} parent=0 // pred_fallthru
    _
  // Predicated region
  $region22: #{target_head_forward.1} parent=0 // pred_check
    _
  $region23: #{target_head_forward.1} parent=0 // pred_check_branch
    %23 = sbr.rel (0) target = $region25
  $region24: #{target_head_forward.1} parent=0 // pred_region
    _
  $region25: #{target_head_forward.1} parent=0 // pred_fallthru
    _
  // Predicated region
  $region26: #{target_head_forward.1} parent=0 // pred_check
    _
  $region27: #{target_head_forward.1} parent=0 // pred_check_branch
    %25 = sbr.rel (0) target = $region29
  $region28: #{target_head_forward.1} parent=0 // pred_region
    _
  $region29: #{target_head_forward.1} parent=0 // pred_fallthru
    _
  %v26 = vld [vmem:[%s1] sm:$0xff]
  %v27 = vld [vmem:[%s0] sm:$0xff]
  %v28 = vlaneseq
  %v29 = vand.u32 %v28, 127
  %30 = vset.pattern.permute.xlu0 0
  %31 = vperm.xlu0 %30, %v27
  %v32 = vpop.permute.xlu0 %31
  %vm33 = vcmp.eq.s32.totalorder %v29, %v32
  %v34 = vsel %vm33, 1, 0
  %v35 = vcvt.s32.f32 %v34
  %v36 = vld [vmem:[%s2] sm:$0xff]
  %v37 = vld [vmem:[%s2 + $0x8] sm:$0xff]
  %v38 = vld [vmem:[%s2 + $0x10] sm:$0xff]
  %v39 = vld [vmem:[%s2 + $0x18] sm:$0xf]
  %v40 = vld [vmem:[%s3] sm:$0xf]
  %vm41 = vcmask 31744
  %v43 = vsel %vm41, %v35, 0
  %vm45 = vcmask 1043456
  %v47 = vsel %vm45, %v40, 0
  %49 = vmatpush.msra.mxu0 0.0
  %50 = vmatpush.msra.mxu0 0.0
  %51 = vmatpush.msra.mxu0 0.0
  %52 = vmatpush.msra.mxu0 0.0
  %53 = vmatpush.msra.mxu0 0.0
  %54 = vmatpush.msra.mxu0 0.0
  %55 = vmatpush.msra.mxu0 0.0
  %56 = vmatpush.msra.mxu0 0.0
  %57 = vmatpush.msra.mxu0 0.0
  %58 = vmatpush.msra.mxu0 0.0
  %59 = vmatpush.msra.mxu0 0.0
  %60 = vmatpush.msra.mxu0 0.0
  %61 = vmatpush.msra.mxu0 0.0
  %62 = vmatpush.msra.mxu0 0.0
  %63 = vmatpush.msra.mxu0 0.0
  %64 = vmatpush.msra.mxu0 %v47
  %65 = vmatmul.f32.gmra.mxu0 %v43
  %v66 = vpop.f32.mrf.mxu0
  %v67 = vadd.f32 0.0, %v66
  %68 = vdwg.mxu0
  %vm69 = vcmask 228352
  %v71 = vsel %vm69, %v26, 0
  %v74 = vsel %vm45, %v39, 0
  %76 = vmatpush.msra.mxu0 0.0
  %77 = vmatpush.msra.mxu0 0.0
  %78 = vmatpush.msra.mxu0 0.0
  %79 = vmatpush.msra.mxu0 0.0
  %80 = vmatpush.msra.mxu0 0.0
  %81 = vmatpush.msra.mxu0 0.0
  %82 = vmatpush.msra.mxu0 0.0
  %83 = vmatpush.msra.mxu0 0.0
  %84 = vmatpush.msra.mxu0 0.0
  %85 = vmatpush.msra.mxu0 0.0
  %86 = vmatpush.msra.mxu0 0.0
  %87 = vmatpush.msra.mxu0 0.0
  %88 = vmatpush.msra.mxu0 %v74
  %89 = vmatpush.msra.mxu0 %v38
  %90 = vmatpush.msra.mxu0 %v37
  %91 = vmatpush.msra.mxu0 %v36
  %92 = vmatmul.f32.gmra.mxu0 %v71
  %v93 = vpop.f32.mrf.mxu0
  %v94 = vadd.f32 %v67, %v93
  %95 = vdwg.mxu0
  %v96 = vld [vmem:[%s4] sm:$0x1]
  %v98 = vperm.slane %v96, 0
  %v100 = vadd.f32 %v94, %v98
  %v101 = vmax.f32 %v100, 0.0
  %v102 = vld [vmem:[%s5] sm:$0xff]
  %v103 = vld [vmem:[%s5 + $0x8] sm:$0xff]
  %v104 = vld [vmem:[%s5 + $0x10] sm:$0xff]
  %v105 = vld [vmem:[%s5 + $0x18] sm:$0xff]
  %v106 = vld [vmem:[%s6] sm:$0x1]
  %v108 = vperm.slane %v106, 0
  %vm110 = vcmask 261120
  %v112 = vsel %vm110, %v101, 0
  %114 = vmatpush.msra.mxu0 0.0
  %115 = vmatpush.msra.mxu0 0.0
  %116 = vmatpush.msra.mxu0 0.0
  %117 = vmatpush.msra.mxu0 0.0
  %118 = vmatpush.msra.mxu0 0.0
  %119 = vmatpush.msra.mxu0 0.0
  %120 = vmatpush.msra.mxu0 0.0
  %121 = vmatpush.msra.mxu0 0.0
  %122 = vmatpush.msra.mxu0 0.0
  %123 = vmatpush.msra.mxu0 0.0
  %124 = vmatpush.msra.mxu0 0.0
  %125 = vmatpush.msra.mxu0 0.0
  %126 = vmatpush.msra.mxu0 %v105
  %127 = vmatpush.msra.mxu0 %v104
  %128 = vmatpush.msra.mxu0 %v103
  %129 = vmatpush.msra.mxu0 %v102
  %130 = vmatmul.f32.gmra.mxu0 %v112
  %v131 = vpop.f32.mrf.mxu0
  %v132 = vadd.f32 %v108, %v131
  %133 = vdwg.mxu0
  %v134 = vpack.c.bf16 %v132, %v132
  %vm135 = vcmask 125952
  %136 = vst.msk [vmem:[%s7] sm:$0xf] %vm135, %v134
  // Predicated region
  $region30: #{target_head_forward.1} parent=0 // pred_check
    _
  $region31: #{target_head_forward.1} parent=0 // pred_check_branch
    %138 = sbr.rel (0) target = $region33
  $region32: #{target_head_forward.1} parent=0 // pred_region
    _
  $region33: #{target_head_forward.1} parent=0 // pred_fallthru
    _
  // Predicated region
  $region34: #{target_head_forward.1} parent=0 // pred_check
    _
  $region35: #{target_head_forward.1} parent=0 // pred_check_branch
    %140 = sbr.rel (0) target = $region37
  $region36: #{target_head_forward.1} parent=0 // pred_region
    _
  $region37: #{target_head_forward.1} parent=0 // pred_fallthru
    _

</llo_original>
